<compile_context>
chip_gen: v7x
topology: tpu7x:2x2x1
jax: 0.10.0
libtpu: 0.0.40
codegen_flags: <defaults>
</compile_context>

<pallas_src>
import jax
import jax.numpy as jnp
from jax.experimental import pallas as pl
from jax.experimental.pallas import tpu as pltpu


# ----------------------------------------------------------------------------
# Pallas kernel: one grid step = one complete output row tile.
#   acc  = x_rows @ W_self                          (self-loop, eval-mode dropout = id)
#   acc += A'[rows, :] @ M_stacked                  (single stacked-basis contraction)
#   out  = acc + bias                               (identity activation)
# All matmuls run bf16 x bf16 on the MXU with f32 accumulation; the accumulator
# lives in registers and each tile is stored exactly once (lane-dense, unmasked vst).
# ----------------------------------------------------------------------------
def _rgcn_kernel(adj_ref, xrow_ref, m_ref, wself_ref, bias_ref, out_ref):
    acc = jnp.dot(xrow_ref[...], wself_ref[...], preferred_element_type=jnp.float32)
    acc = acc + jnp.dot(adj_ref[...], m_ref[...], preferred_element_type=jnp.float32)
    out_ref[...] = acc + bias_ref[...]


def _round_up(v, m):
    return ((v + m - 1) // m) * m


def _vmem_limit_bytes():
    """Scoped-VMEM limit: ~3/4 of the chip's physical capacity.
    v5e/v6e (128 MiB) -> 96 MiB, v7x (64 MiB) -> 48 MiB; safe 48 MiB fallback."""
    cap = 64 * 1024 * 1024
    try:
        cap = int(getattr(pltpu.get_tpu_info(), "vmem_capacity_bytes", cap))
    except Exception:
        pass
    return (cap * 3) // 4


def _pick_row_tile(num_nodes, k_bases, input_dim, dp, vmem_budget, cap=1024):
    """Largest multiple-of-8 row tile whose FULL working set fits the VMEM budget.

    Every stream is counted double-buffered (conservative — the loop-invariant blocks
    are not re-DMA'd by the pipeline but still occupy buffers):
      per-step varying : adjacency (t, K*N) bf16, x rows (t, Din) bf16, out (t, Dp) f32
      loop-invariant   : M (K*N, Dp) bf16, W_self (Din, Dp) bf16, bias (1, Dp) f32
    The tile is additionally capped at ~ceil(N/2) so the 1-D grid has >= 2 steps and
    ("parallel",) can shard rows across both TensorCores on v7x.
    """
    kn = k_bases * num_nodes
    fixed = 2 * (kn * dp * 2 + input_dim * dp * 2 + dp * 4)
    per_row = 2 * (kn * 2 + input_dim * 2 + dp * 4)
    t_mem = max((vmem_budget - fixed) // per_row, 8)
    t_mc = _round_up(max((num_nodes + 1) // 2, 8), 8)  # guarantee >= 2 grid steps
    t = min(cap, t_mem, t_mc)
    return max((t // 8) * 8, 8)


# ----------------------------------------------------------------------------
# Glue: alpha-folded, symmetrized adjacency built DIRECTLY from the edge list
# (mirrors _reduce_relation_specific's [src,tgt]/[tgt,src] concatenation) —
# the per-relation (R, N, N) intermediate is never materialized.
#   A'[t, k, s] = sum over symmetrized edges (s -> t, type r) of alpha_comb[r, k] * w
# ----------------------------------------------------------------------------
def build_folded_adjacency(source, target, edge_type, edge_weights, alpha_comb, num_nodes):
    s2 = jnp.concatenate([source, target])
    t2 = jnp.concatenate([target, source])
    et2 = jnp.concatenate([edge_type, edge_type])
    if edge_weights is None:
        w2 = jnp.ones(s2.shape, dtype=jnp.float32)
    else:
        w2 = jnp.concatenate([edge_weights, edge_weights]).astype(jnp.float32)
    vals = alpha_comb[et2] * w2[:, None]                       # (2E, K)
    k_bases = alpha_comb.shape[-1]
    adj = jnp.zeros((num_nodes, k_bases, num_nodes), dtype=jnp.float32)
    return adj.at[t2, :, s2].add(vals)                         # (N, K, N), index_add semantics


# ----------------------------------------------------------------------------
# Wrapper: algebraic fusion + hoisted projection + padding + casts (plain-JAX
# layout plumbing), then a single pallas_call.
# ----------------------------------------------------------------------------
def rgcn_layer_pallas(x, source, target, edge_type, edge_weights,
                      bases_fwd, alpha_fwd, bases_bwd, alpha_bwd, w_self, bias):
    num_nodes, input_dim = x.shape
    output_dim = bases_fwd.shape[-1]

    # fwd and bwd share the same symmetrized adjacency, so
    #   sum_r A_r @ (x @ (Wf_r + Wb_r)) = A' @ M_stacked
    # with combined bases B' = [B^fwd; B^bwd]  (K = 2 * num_bases).
    alpha_comb = jnp.concatenate([alpha_fwd, alpha_bwd], axis=-1)        # (R, K)
    bases_comb = jnp.concatenate([bases_fwd, bases_bwd], axis=0)         # (K, Din, Dout)
    k_bases = bases_comb.shape[0]
    adj = build_folded_adjacency(source, target, edge_type, edge_weights,
                                 alpha_comb, num_nodes)                  # (N, K, N) f32

    # Hoisted basis projection (f32, single bf16 rounding), stacked over K.
    m = jnp.einsum("ni,kio->kno", x, bases_comb)                         # (K, N, Dout) f32

    # Lane-dense output padding (Dout -> multiple of 128).
    dp = _round_up(output_dim, 128)
    pad_o = dp - output_dim
    m_p = jnp.pad(m, ((0, 0), (0, 0), (0, pad_o)))                       # (K, N, Dp)
    wself_p = jnp.pad(w_self, ((0, 0), (0, pad_o)))                      # (Din, Dp)
    bias_p = jnp.pad(bias, ((0, pad_o),)).reshape(1, dp).astype(jnp.float32)

    # VMEM-budgeted row tiling (>= 2 grid steps) + row padding for a cdiv grid.
    vmem_limit = _vmem_limit_bytes()
    tile_n = _pick_row_tile(num_nodes, k_bases, input_dim, dp,
                            vmem_budget=vmem_limit - 8 * 1024 * 1024)
    n_pad = _round_up(num_nodes, tile_n)
    num_tiles = n_pad // tile_n
    kn = k_bases * num_nodes

    # bf16 input streams (one rounding each), f32 accumulation inside the kernel.
    adj_bf = jnp.pad(adj.reshape(num_nodes, kn),
                     ((0, n_pad - num_nodes), (0, 0))).astype(jnp.bfloat16)   # (N_pad, K*N)
    xrow_bf = jnp.pad(x, ((0, n_pad - num_nodes), (0, 0))).astype(jnp.bfloat16)
    m_bf = m_p.reshape(kn, dp).astype(jnp.bfloat16)                           # (K*N, Dp)
    wself_bf = wself_p.astype(jnp.bfloat16)

    y_padded = pl.pallas_call(
        _rgcn_kernel,
        out_shape=jax.ShapeDtypeStruct((n_pad, dp), jnp.float32),
        grid_spec=pltpu.PrefetchScalarGridSpec(
            num_scalar_prefetch=0,
            grid=(num_tiles,),
            in_specs=[
                pl.BlockSpec((tile_n, kn), lambda i: (i, 0)),         # A' row tile (varies)
                pl.BlockSpec((tile_n, input_dim), lambda i: (i, 0)),  # x row tile (self-loop)
                pl.BlockSpec((kn, dp), lambda i: (0, 0)),             # stacked projections M
                pl.BlockSpec((input_dim, dp), lambda i: (0, 0)),      # W_self (padded)
                pl.BlockSpec((1, dp), lambda i: (0, 0)),              # bias (padded)
            ],
            out_specs=pl.BlockSpec((tile_n, dp), lambda i: (i, 0)),
        ),
        compiler_params=pltpu.CompilerParams(
            dimension_semantics=("parallel",),
            vmem_limit_bytes=vmem_limit,
        ),
    )(adj_bf, xrow_bf, m_bf, wself_bf, bias_p)

    # Strip the row / lane padding back off.
    return y_padded[:num_nodes, :output_dim]


# ----------------------------------------------------------------------------
# Pure-JAX (f32) reference of the PyTorch forward (for verification).
# ----------------------------------------------------------------------------
def rgcn_layer_reference(x, source, target, edge_type, edge_weights,
                         w_fwd, w_bwd, w_self, bias):
    num_nodes = x.shape[0]
    y = x @ w_self

    def message_pass(W, src, tgt):
        s = jnp.concatenate([src, tgt])
        t = jnp.concatenate([tgt, src])
        et = jnp.concatenate([edge_type, edge_type])
        if edge_weights is None:
            w = jnp.ones(s.shape, dtype=jnp.float32)
        else:
            w = jnp.concatenate([edge_weights, edge_weights]).astype(jnp.float32)
        m = jnp.einsum("ei,eio->eo", x[s], W[et]) * w[:, None]
        out = jnp.zeros((num_nodes, W.shape[-1]), dtype=jnp.float32)
        return out.at[t].add(m)

    y = y + message_pass(w_fwd, source, target)
    y = y + message_pass(w_bwd, target, source)
    return y + bias


if __name__ == "__main__":
    key = jax.random.PRNGKey(0)

    # Small, module-consistent shapes.
    num_nodes = 64
    input_dim = 32
    output_dim = 32
    num_relations = 4
    num_bases = 2          # BasesDecomposition default fallback
    num_edges = 50

    (k_x, k_src, k_tgt, k_et, k_ew,
     k_bf, k_bb, k_af, k_ab, k_ws) = jax.random.split(key, 10)

    # Graph inputs.
    x = jax.random.normal(k_x, (num_nodes, input_dim), dtype=jnp.float32)
    source = jax.random.randint(k_src, (num_edges,), 0, num_nodes)
    target = jax.random.randint(k_tgt, (num_edges,), 0, num_nodes)
    edge_type = jax.random.randint(k_et, (num_edges,), 0, num_relations)
    edge_weights = jax.random.uniform(k_ew, (num_edges,), dtype=jnp.float32)

    # Parameters (deterministic synthetic init mirroring the module's shapes).
    xavier_std = (2.0 / (input_dim + output_dim)) ** 0.5
    bases_fwd = xavier_std * jax.random.normal(
        k_bf, (num_bases, input_dim, output_dim), dtype=jnp.float32)
    bases_bwd = xavier_std * jax.random.normal(
        k_bb, (num_bases, input_dim, output_dim), dtype=jnp.float32)
    # uniform_norm_p1_: uniform weights, L1-normalized per relation.
    alpha_fwd = jax.random.uniform(k_af, (num_relations, num_bases), dtype=jnp.float32)
    alpha_fwd = alpha_fwd / jnp.sum(jnp.abs(alpha_fwd), axis=-1, keepdims=True)
    alpha_bwd = jax.random.uniform(k_ab, (num_relations, num_bases), dtype=jnp.float32)
    alpha_bwd = alpha_bwd / jnp.sum(jnp.abs(alpha_bwd), axis=-1, keepdims=True)
    w_self = xavier_std * jax.random.normal(
        k_ws, (input_dim, output_dim), dtype=jnp.float32)
    bias = jnp.zeros((output_dim,), dtype=jnp.float32)

    # Run the Pallas kernel (fusion / padding / casts live in the wrapper).
    y = rgcn_layer_pallas(x, source, target, edge_type, edge_weights,
                          bases_fwd, alpha_fwd, bases_bwd, alpha_bwd, w_self, bias)
    y = jax.block_until_ready(y)

    # Verify against the pure-JAX f32 reference of the PyTorch forward.
    w_fwd = jnp.einsum("rb,bio->rio", alpha_fwd, bases_fwd)
    w_bwd = jnp.einsum("rb,bio->rio", alpha_bwd, bases_bwd)
    y_ref = rgcn_layer_reference(
        x, source, target, edge_type, edge_weights, w_fwd, w_bwd, w_self, bias)
    y_ref = jax.block_until_ready(y_ref)

    assert y.shape == (num_nodes, output_dim)
    # Tolerance tightened vs. the previous revision: the projection is now computed
    # once in f32 and cast to bf16 a single time (no m_k double rounding); remaining
    # error is the intentional bf16 streaming of adjacency / x / weights.
    max_err = float(jnp.max(jnp.abs(y - y_ref)))
    assert jnp.allclose(y, y_ref, atol=7.5e-2, rtol=5e-2), max_err

    print("KERNEL_OK")
</pallas_src>

<mosaic_0001>
module attributes {stable_mosaic.version = 11 : i64} {
  func.func @_rgcn_kernel(%arg0: i32, %arg1: memref<32x256xbf16, #tpu.memory_space<vmem>>, %arg2: memref<32x32xbf16, #tpu.memory_space<vmem>>, %arg3: memref<256x128xbf16, #tpu.memory_space<vmem>>, %arg4: memref<32x128xbf16, #tpu.memory_space<vmem>>, %arg5: memref<1x128xf32, #tpu.memory_space<vmem>>, %arg6: memref<32x128xf32, #tpu.memory_space<vmem>>) attributes {dimension_semantics = [#tpu.dimension_semantics<parallel>], iteration_bounds = array<i64: 2>, scalar_prefetch = 0 : i64, scratch_operands = 0 : i64, tpu.core_type = #tpu.core_type<tc>, window_params = [{transform_indices = @transform_0, window_bounds = array<i64: 32, 256>}, {transform_indices = @transform_1, window_bounds = array<i64: 32, 32>}, {pipeline_mode = #tpu.pipeline_mode<synchronous>, transform_indices = @transform_2, window_bounds = array<i64: 256, 128>}, {pipeline_mode = #tpu.pipeline_mode<synchronous>, transform_indices = @transform_3, window_bounds = array<i64: 32, 128>}, {pipeline_mode = #tpu.pipeline_mode<synchronous>, transform_indices = @transform_4, window_bounds = array<i64: 1, 128>}, {transform_indices = @transform_5, window_bounds = array<i64: 32, 128>}]} {
    %c0 = arith.constant 0 : index
    %c0_0 = arith.constant 0 : index
    %0 = vector.load %arg2[%c0, %c0_0] : memref<32x32xbf16, #tpu.memory_space<vmem>>, vector<32x32xbf16>
    %c0_1 = arith.constant 0 : index
    %c0_2 = arith.constant 0 : index
    %1 = vector.load %arg4[%c0_1, %c0_2] : memref<32x128xbf16, #tpu.memory_space<vmem>>, vector<32x128xbf16>
    %cst = arith.constant dense<0.000000e+00> : vector<32x128xf32>
    %2 = tpu.matmul %0, %1, %cst {dimension_numbers = #tpu.dot_dimension_numbers<[1], [0], [0], [1], [0, 0, 1, 1], [], []>} : vector<32x32xbf16>, vector<32x128xbf16>, vector<32x128xf32> -> vector<32x128xf32>
    %c0_3 = arith.constant 0 : index
    %c0_4 = arith.constant 0 : index
    %3 = vector.load %arg1[%c0_3, %c0_4] : memref<32x256xbf16, #tpu.memory_space<vmem>>, vector<32x256xbf16>
    %c0_5 = arith.constant 0 : index
    %c0_6 = arith.constant 0 : index
    %4 = vector.load %arg3[%c0_5, %c0_6] : memref<256x128xbf16, #tpu.memory_space<vmem>>, vector<256x128xbf16>
    %cst_7 = arith.constant dense<0.000000e+00> : vector<32x128xf32>
    %5 = tpu.matmul %3, %4, %cst_7 {dimension_numbers = #tpu.dot_dimension_numbers<[1], [0], [0], [1], [0, 0, 1, 1], [], []>} : vector<32x256xbf16>, vector<256x128xbf16>, vector<32x128xf32> -> vector<32x128xf32>
    %6 = arith.addf %2, %5 : vector<32x128xf32>
    %c0_8 = arith.constant 0 : index
    %c0_9 = arith.constant 0 : index
    %7 = vector.load %arg5[%c0_8, %c0_9] : memref<1x128xf32, #tpu.memory_space<vmem>>, vector<1x128xf32>
    %8 = vector.broadcast %7 : vector<1x128xf32> to vector<32x128xf32>
    %9 = arith.addf %6, %8 : vector<32x128xf32>
    %c0_10 = arith.constant 0 : index
    %c0_11 = arith.constant 0 : index
    %10 = vector.load %arg6[%c0_10, %c0_11] : memref<32x128xf32, #tpu.memory_space<vmem>>, vector<32x128xf32>
    tpu.vector_store %arg6[%c0_10, %c0_11], %9 {strides = array<i32>} : memref<32x128xf32, #tpu.memory_space<vmem>>, vector<32x128xf32>,
    return
  }
  func.func @transform_0(%arg0: i32) -> (i32, i32) {
    %c0_i32 = arith.constant 0 : i32
    %c0_i32_0 = arith.constant 0 : i32
    return %arg0, %c0_i32 : i32, i32
  }
  func.func @transform_1(%arg0: i32) -> (i32, i32) {
    %c0_i32 = arith.constant 0 : i32
    %c0_i32_0 = arith.constant 0 : i32
    return %arg0, %c0_i32 : i32, i32
  }
  func.func @transform_2(%arg0: i32) -> (i32, i32) {
    %c0_i32 = arith.constant 0 : i32
    %c0_i32_0 = arith.constant 0 : i32
    %c0_i32_1 = arith.constant 0 : i32
    return %c0_i32, %c0_i32_0 : i32, i32
  }
  func.func @transform_3(%arg0: i32) -> (i32, i32) {
    %c0_i32 = arith.constant 0 : i32
    %c0_i32_0 = arith.constant 0 : i32
    %c0_i32_1 = arith.constant 0 : i32
    return %c0_i32, %c0_i32_0 : i32, i32
  }
  func.func @transform_4(%arg0: i32) -> (i32, i32) {
    %c0_i32 = arith.constant 0 : i32
    %c0_i32_0 = arith.constant 0 : i32
    %c0_i32_1 = arith.constant 0 : i32
    return %c0_i32, %c0_i32_0 : i32, i32
  }
  func.func @transform_5(%arg0: i32) -> (i32, i32) {
    %c0_i32 = arith.constant 0 : i32
    %c0_i32_0 = arith.constant 0 : i32
    return %arg0, %c0_i32 : i32, i32
  }
}

</mosaic_0001>

<llo_original>
// kernel: tpu_custom_call.1
$region0: #{tpu_custom_call.1}
  #allocation0 [shape = 'u32[]', space=smem, size = 0x4, offset = 0x4, fixed_abs, tag = 'smem constant byte address 0x4 - core index']
  #allocation1 [shape = 'u32[144,128]{1,0:T(1,128)}', space=vmem, size = 0x12000, scoped, tag = 'internal scratch']
  %s0 = inlined_call_operand.hbm [shape: bf16[64,256], index: 0, kind: input, shape index: {}]
  %s1 = inlined_call_operand.vmem [shape: bf16[64,32], index: 1, kind: input, shape index: {}]
  %s2 = inlined_call_operand.hbm [shape: bf16[256,128], index: 2, kind: input, shape index: {}]
  %s3 = inlined_call_operand.vmem [shape: bf16[32,128], index: 3, kind: input, shape index: {}]
  %s4 = inlined_call_operand.vmem [shape: f32[1,128], index: 4, kind: input, shape index: {}]
  %s5 = inlined_call_operand.hbm [shape: f32[64,128], index: 5, kind: output, shape index: {}]
  %s6 = sld [smem:[#allocation0]]
  $region61: #{tpu_custom_call.1} parent=0
    _
  %s8 = ssub.s32 1, %s6
  %s9 = scalar_select 0, %s8, %s6
  $region1: #{tpu_custom_call.1} parent=0
    #allocation2 [shape = 'u8[32768]{0}', space=vmem, size = 0x8000, scoped, tag = 'input window, operand 0']
    #allocation3 [shape = 's32[2]{0}', space=sflag, size = 0x8, scoped, tag = 'scoped memory for tpu_custom_call.1']
    #allocation4 [shape = 's32[2]{0}', space=sflag, size = 0x8, scoped, tag = 'scoped memory for tpu_custom_call.1']
    #allocation5 [shape = 'u8[65536]{0}', space=vmem, size = 0x10000, scoped, tag = 'input window, operand 2, single buffered']
    #allocation6 [shape = 's32[1]{0}', space=sflag, size = 0x4, scoped, tag = 'scoped memory for tpu_custom_call.1']
    #allocation7 [shape = 'u8[32768]{0}', space=vmem, size = 0x8000, scoped, tag = 'output window, operand 0']
    %10 = vsyncpa [#allocation3], 0
    %s11 = scalar_lea.sflag [#allocation3], 1
    %12 = vsyncpa %s11, 0
    %13 = vsyncpa [#allocation6], 0
    %14 = vsyncpa [#allocation4], 0
    %s15 = scalar_lea.sflag [#allocation4], 1
    %16 = vsyncpa %s15, 0
    loop: start=0, step=1, limit=4
    $region2: #{tpu_custom_call.1} parent=1 // loop_pre_header
      _
    $region3: #{tpu_custom_call.1} parent=1 // loop_header
      %s18 = sphi 0, %s22
      %p19 = scmp.ge.s32.totalorder %s18, 4
      %s28 = sphi 0, %s30
      %s31 = sphi 0, %s28
      %s32 = sphi 0, %s31
      %s48 = sphi 0, %s32
      %s54 = sphi 0, %s56
      %s57 = sphi 0, %s54
      %s58 = sphi 0, %s57
      %s74 = sphi 0, %s58
      %s78 = sphi 0, %s78
      %s80 = sphi 0, %s78
      %s81 = sphi 0, %s80
      %s95 = sphi 0, %s81
      %s99 = sphi 0, %s99
      %s101 = sphi 0, %s99
      %s102 = sphi 0, %s101
      %s116 = sphi 0, %s102
      %s120 = sphi 0, %s120
      %s122 = sphi 0, %s120
      %s123 = sphi 0, %s122
      %s137 = sphi 0, %s123
      %s143 = sphi 0, %s145
      %s146 = sphi 0, %s143
      %s147 = sphi 0, %s146
      %s163 = sphi 0, %s147
    $region4: #{tpu_custom_call.1} parent=1 // loop_header_branch
      %21 = sbr.rel (%p19) target = $region8
    $region5: #{tpu_custom_call.1} parent=1 // loop_body
      %s23 = ssub.s32 %s18, 1
      %s24 = ssub.s32 %s18, 2
      %s25 = sadd.s32 %s18, 1
      %s26 = ssub.s32 %s18, %s25
      %p27 = scmp.eq.s32.totalorder %s26, 0
      %s29 = sadd.s32 %s28, 1
      %s30 = scalar_select %p27, %s28, %s29
      %p33 = pneg %p27
      %p34 = scmp.eq.s32.totalorder %s18, 1
      %p35 = por %p33, %p34
      %p36 = scmp.ne.s32.totalorder %s28, %s31
      %p37 = scmp.eq.s32.totalorder %s18, 0
      %p38 = por %p36, %p37
      %p39 = scmp.ne.s32.totalorder %s28, %s31
      %p40 = scmp.eq.s32.totalorder %s23, 1
      %p41 = por %p39, %p40
      %p42 = scmp.ne.s32.totalorder %s31, %s32
      %p43 = scmp.eq.s32.totalorder %s23, 0
      %p44 = por %p42, %p43
      %p45 = scmp.ne.s32.totalorder %s31, %s32
      %p46 = scmp.eq.s32.totalorder %s24, 1
      %p47 = por %p45, %p46
      %p49 = scmp.ne.s32.totalorder %s32, %s48
      %p50 = scmp.eq.s32.totalorder %s24, 0
      %p51 = por %p49, %p50
      %s52 = ssub.s32 %s18, %s25
      %p53 = scmp.eq.s32.totalorder %s52, 0
      %s55 = sadd.s32 %s54, 1
      %s56 = scalar_select %p53, %s54, %s55
      %p59 = pneg %p53
      %p60 = scmp.eq.s32.totalorder %s18, 1
      %p61 = por %p59, %p60
      %p62 = scmp.ne.s32.totalorder %s54, %s57
      %p63 = scmp.eq.s32.totalorder %s18, 0
      %p64 = por %p62, %p63
      %p65 = scmp.ne.s32.totalorder %s54, %s57
      %p66 = scmp.eq.s32.totalorder %s23, 1
      %p67 = por %p65, %p66
      %p68 = scmp.ne.s32.totalorder %s57, %s58
      %p69 = scmp.eq.s32.totalorder %s23, 0
      %p70 = por %p68, %p69
      %p71 = scmp.ne.s32.totalorder %s57, %s58
      %p72 = scmp.eq.s32.totalorder %s24, 1
      %p73 = por %p71, %p72
      %p75 = scmp.ne.s32.totalorder %s58, %s74
      %p76 = scmp.eq.s32.totalorder %s24, 0
      %p77 = por %p75, %p76
      %s79 = sadd.s32 %s78, 1
      %p82 = scmp.eq.s32.totalorder %s18, 1
      %p83 = scmp.ne.s32.totalorder %s78, %s80
      %p84 = scmp.eq.s32.totalorder %s18, 0
      %p85 = por %p83, %p84
      %p86 = scmp.ne.s32.totalorder %s78, %s80
      %p87 = scmp.eq.s32.totalorder %s23, 1
      %p88 = por %p86, %p87
      %p89 = scmp.ne.s32.totalorder %s80, %s81
      %p90 = scmp.eq.s32.totalorder %s23, 0
      %p91 = por %p89, %p90
      %p92 = scmp.ne.s32.totalorder %s80, %s81
      %p93 = scmp.eq.s32.totalorder %s24, 1
      %p94 = por %p92, %p93
      %p96 = scmp.ne.s32.totalorder %s81, %s95
      %p97 = scmp.eq.s32.totalorder %s24, 0
      %p98 = por %p96, %p97
      %s100 = sadd.s32 %s99, 1
      %p103 = scmp.eq.s32.totalorder %s18, 1
      %p104 = scmp.ne.s32.totalorder %s99, %s101
      %p105 = scmp.eq.s32.totalorder %s18, 0
      %p106 = por %p104, %p105
      %p107 = scmp.ne.s32.totalorder %s99, %s101
      %p108 = scmp.eq.s32.totalorder %s23, 1
      %p109 = por %p107, %p108
      %p110 = scmp.ne.s32.totalorder %s101, %s102
      %p111 = scmp.eq.s32.totalorder %s23, 0
      %p112 = por %p110, %p111
      %p113 = scmp.ne.s32.totalorder %s101, %s102
      %p114 = scmp.eq.s32.totalorder %s24, 1
      %p115 = por %p113, %p114
      %p117 = scmp.ne.s32.totalorder %s102, %s116
      %p118 = scmp.eq.s32.totalorder %s24, 0
      %p119 = por %p117, %p118
      %s121 = sadd.s32 %s120, 1
      %p124 = scmp.eq.s32.totalorder %s18, 1
      %p125 = scmp.ne.s32.totalorder %s120, %s122
      %p126 = scmp.eq.s32.totalorder %s18, 0
      %p127 = por %p125, %p126
      %p128 = scmp.ne.s32.totalorder %s120, %s122
      %p129 = scmp.eq.s32.totalorder %s23, 1
      %p130 = por %p128, %p129
      %p131 = scmp.ne.s32.totalorder %s122, %s123
      %p132 = scmp.eq.s32.totalorder %s23, 0
      %p133 = por %p131, %p132
      %p134 = scmp.ne.s32.totalorder %s122, %s123
      %p135 = scmp.eq.s32.totalorder %s24, 1
      %p136 = por %p134, %p135
      %p138 = scmp.ne.s32.totalorder %s123, %s137
      %p139 = scmp.eq.s32.totalorder %s24, 0
      %p140 = por %p138, %p139
      %s141 = ssub.s32 %s18, %s25
      %p142 = scmp.eq.s32.totalorder %s141, 0
      %s144 = sadd.s32 %s143, 1
      %s145 = scalar_select %p142, %s143, %s144
      %p148 = pneg %p142
      %p149 = scmp.eq.s32.totalorder %s18, 1
      %p150 = por %p148, %p149
      %p151 = scmp.ne.s32.totalorder %s143, %s146
      %p152 = scmp.eq.s32.totalorder %s18, 0
      %p153 = por %p151, %p152
      %p154 = scmp.ne.s32.totalorder %s143, %s146
      %p155 = scmp.eq.s32.totalorder %s23, 1
      %p156 = por %p154, %p155
      %p157 = scmp.ne.s32.totalorder %s146, %s147
      %p158 = scmp.eq.s32.totalorder %s23, 0
      %p159 = por %p157, %p158
      %p160 = scmp.ne.s32.totalorder %s146, %s147
      %p161 = scmp.eq.s32.totalorder %s24, 1
      %p162 = por %p160, %p161
      %p164 = scmp.ne.s32.totalorder %s147, %s163
      %p165 = scmp.eq.s32.totalorder %s24, 0
      %p166 = por %p164, %p165
      %p167 = scmp.le.s32.totalorder 1, %s18
      %p168 = scmp.lt.s32.totalorder %s18, 3
      %p169 = pnand %p167, %p168
      %p170 = pneg %p169
      // Predicated region
      $region9: #{tpu_custom_call.1} parent=5 // pred_check
        _
      $region10: #{tpu_custom_call.1} parent=5 // pred_check_branch
        %172 = sbr.rel (%p169) target = $region12
      $region11: #{tpu_custom_call.1} parent=5 // pred_region
        %s173 = ssub.s32 %s18, 1
        // Predicated region
        $region13: #{tpu_custom_call.1} parent=11 // pred_check
          %p174 = pneg %p91
        $region14: #{tpu_custom_call.1} parent=11 // pred_check_branch
          %176 = sbr.rel (%p174) target = $region16
        $region15: #{tpu_custom_call.1} parent=11 // pred_region
          %s178 = ssub.s32 2048, 2048
          %179 = vsyncadd [#allocation6], %s178
          %s180 = sshll.u32 [#allocation5], 4
          %s181 = int_to_ptr.vmem [resolvable:$true] %s180
          %186 = dma.hbm_to_vmem [thread:$0]  %s2, 2048, %s181, [#allocation6], 64, 64, 4
        $region16: #{tpu_custom_call.1} parent=11 // pred_fallthru
          _
        // Predicated region
        $region17: #{tpu_custom_call.1} parent=11 // pred_check
          %p187 = pneg %p112
        $region18: #{tpu_custom_call.1} parent=11 // pred_check_branch
          %189 = sbr.rel (%p187) target = $region20
        $region19: #{tpu_custom_call.1} parent=11 // pred_region
          _
        $region20: #{tpu_custom_call.1} parent=11 // pred_fallthru
          _
        // Predicated region
        $region21: #{tpu_custom_call.1} parent=11 // pred_check
          %p190 = pneg %p133
        $region22: #{tpu_custom_call.1} parent=11 // pred_check_branch
          %192 = sbr.rel (%p190) target = $region24
        $region23: #{tpu_custom_call.1} parent=11 // pred_region
          _
        $region24: #{tpu_custom_call.1} parent=11 // pred_fallthru
          _
      $region12: #{tpu_custom_call.1} parent=5 // pred_fallthru
        _
      %p193 = scmp.lt.s32.totalorder %s18, 2
      // Predicated region
      $region25: #{tpu_custom_call.1} parent=5 // pred_check
        %p194 = pneg %p193
      $region26: #{tpu_custom_call.1} parent=5 // pred_check_branch
        %196 = sbr.rel (%p194) target = $region28
      $region27: #{tpu_custom_call.1} parent=5 // pred_region
        // Predicated region
        $region29: #{tpu_custom_call.1} parent=27 // pred_check
          %p197 = pneg %p38
        $region30: #{tpu_custom_call.1} parent=27 // pred_check_branch
          %199 = sbr.rel (%p197) target = $region32
        $region31: #{tpu_custom_call.1} parent=27 // pred_region
          %s200 = sand.u32 %s28, 1
          %s201 = scalar_lea.sflag [#allocation3], %s200
          %s202 = sand.u32 %s28, 1
          %s203 = smul.addr %s202, 32
          %s204 = scalar_lea.vmem [#allocation2], %s203
          %s205 = smul.u32 4, %s18
          %s207 = ssub.s32 512, 512
          %208 = vsyncadd %s201, %s207
          %s209 = smul.addr %s205, 2
          %s210 = smul.addr %s209, 64
          %s211 = scalar_lea.hbm %s0, %s210
          %s212 = sshll.u32 %s204, 4
          %s213 = int_to_ptr.vmem [resolvable:$true] %s212
          %218 = dma.hbm_to_vmem [thread:$0]  %s211, 512, %s213, %s201, 128, 128, 8
        $region32: #{tpu_custom_call.1} parent=27 // pred_fallthru
          _
        // Predicated region
        $region33: #{tpu_custom_call.1} parent=27 // pred_check
          %p219 = pneg %p64
        $region34: #{tpu_custom_call.1} parent=27 // pred_check_branch
          %221 = sbr.rel (%p219) target = $region36
        $region35: #{tpu_custom_call.1} parent=27 // pred_region
          %s222 = smul.u32 4, %s18
          %p223 = scmp.lt.s32.totalorder %s222, 7
          %s224 = scalar_select %p223, %s222, 7
          %s225 = smul.addr %s224, 4
          %s226 = scalar_lea.vmem %s1, %s225
          %s227 = smul.u32 4, %s18
        $region36: #{tpu_custom_call.1} parent=27 // pred_fallthru
          _
      $region28: #{tpu_custom_call.1} parent=5 // pred_fallthru
        _
      %p228 = scmp.le.s32.totalorder 1, %s18
      %p229 = scmp.lt.s32.totalorder %s18, 3
      %p230 = pnand %p228, %p229
      %p231 = pneg %p230
      // Predicated region
      $region37: #{tpu_custom_call.1} parent=5 // pred_check
        _
      $region38: #{tpu_custom_call.1} parent=5 // pred_check_branch
        %233 = sbr.rel (%p230) target = $region40
      $region39: #{tpu_custom_call.1} parent=5 // pred_region
        %s234 = ssub.s32 %s18, 1
        %s235 = sand.u32 %s31, 1
        %s236 = scalar_lea.sflag [#allocation3], %s235
        %s237 = sand.u32 %s31, 1
        %s238 = smul.addr %s237, 32
        %s239 = scalar_lea.vmem [#allocation2], %s238
        // Predicated region
        $region41: #{tpu_custom_call.1} parent=39 // pred_check
          %p240 = pneg %p44
        $region42: #{tpu_custom_call.1} parent=39 // pred_check_branch
          %242 = sbr.rel (%p240) target = $region44
        $region43: #{tpu_custom_call.1} parent=39 // pred_region
          %243 = dma.done %s236, 512
        $region44: #{tpu_custom_call.1} parent=39 // pred_fallthru
          _
        // Predicated region
        $region45: #{tpu_custom_call.1} parent=39 // pred_check
          %p244 = pneg %p91
        $region46: #{tpu_custom_call.1} parent=39 // pred_check_branch
          %246 = sbr.rel (%p244) target = $region48
        $region47: #{tpu_custom_call.1} parent=39 // pred_region
          %247 = dma.done [#allocation6], 2048
        $region48: #{tpu_custom_call.1} parent=39 // pred_fallthru
          _
        %s248 = sand.u32 %s31, 1
        %s249 = scalar_lea.sflag [#allocation3], %s248
        %s250 = sand.u32 %s31, 1
        %s251 = smul.addr %s250, 32
        %s252 = scalar_lea.vmem [#allocation2], %s251
        %p253 = pneg %p44
        %p254 = pneg %p41
        %s255 = smul.u32 4, %s23
        %p256 = scmp.lt.s32.totalorder %s255, 7
        %s257 = scalar_select %p256, %s255, 7
        %s258 = smul.addr %s257, 4
        %s259 = scalar_lea.vmem %s1, %s258
        %p260 = pneg %p70
        %p261 = pneg %p67
        %p262 = pneg %p91
        %p263 = pneg %p88
        %p264 = pneg %p112
        %p265 = pneg %p109
        %p266 = pneg %p133
        %p267 = pneg %p130
        %p268 = pneg %p159
        %p269 = pneg %p156
        %s270 = sand.u32 %s146, 1
        %s271 = scalar_lea.sflag [#allocation4], %s270
        %s272 = sand.u32 %s146, 1
        %s273 = smul.addr %s272, 32
        %s274 = scalar_lea.vmem [#allocation7], %s273
        %s275 = smul.u32 4, %s23
        %s276 = smul.u32 4, %s23
        %p277 = scmp.lt.s32.totalorder %s276, 7
        %s278 = scalar_select %p277, %s276, 7
        %s279 = smul.addr %s278, 4
        %s280 = scalar_lea.vmem %s1, %s279
        %s281 = smul.u32 4, %s23
        %s282 = smul.u32 4, %s23
        %v284 = vld [vmem:[%s280] sm:$0xf]
        %v285 = vld [vmem:[%s280 + $0x4] sm:$0xf]
        %v286 = vld [vmem:[%s280 + $0x8] sm:$0xf]
        %v287 = vld [vmem:[%s280 + $0xc] sm:$0xf]
        %v288 = vld [vmem:[%s3] sm:$0xf]
        %v289 = vld [vmem:[%s3 + $0x4] sm:$0xf]
        %v290 = vld [vmem:[%s3 + $0x8] sm:$0xf]
        %v291 = vld [vmem:[%s3 + $0xc] sm:$0xf]
        %v292 = vld [vmem:[%s239] sm:$0xff]
        %v293 = vld [vmem:[%s239 + $0x8] sm:$0xff]
        %v294 = vld [vmem:[%s239 + $0x10] sm:$0xff]
        %v295 = vld [vmem:[%s239 + $0x18] sm:$0xff]
        %v296 = vld [vmem:[#allocation5] sm:$0xf]
        %v297 = vld [vmem:[#allocation5 + $0x4] sm:$0xf]
        %v298 = vld [vmem:[#allocation5 + $0x8] sm:$0xf]
        %v299 = vld [vmem:[#allocation5 + $0xc] sm:$0xf]
        %v300 = vld [vmem:[#allocation5 + $0x10] sm:$0xf]
        %v301 = vld [vmem:[#allocation5 + $0x14] sm:$0xf]
        %v302 = vld [vmem:[#allocation5 + $0x18] sm:$0xf]
        %v303 = vld [vmem:[#allocation5 + $0x1c] sm:$0xf]
        %v304 = vld [vmem:[#allocation5 + $0x20] sm:$0xf]
        %v305 = vld [vmem:[#allocation5 + $0x24] sm:$0xf]
        %v306 = vld [vmem:[#allocation5 + $0x28] sm:$0xf]
        %v307 = vld [vmem:[#allocation5 + $0x2c] sm:$0xf]
        %v308 = vld [vmem:[#allocation5 + $0x30] sm:$0xf]
        %v309 = vld [vmem:[#allocation5 + $0x34] sm:$0xf]
        %v310 = vld [vmem:[#allocation5 + $0x38] sm:$0xf]
        %v311 = vld [vmem:[#allocation5 + $0x3c] sm:$0xf]
        %v312 = vld [vmem:[#allocation5 + $0x40] sm:$0xf]
        %v313 = vld [vmem:[#allocation5 + $0x44] sm:$0xf]
        %v314 = vld [vmem:[#allocation5 + $0x48] sm:$0xf]
        %v315 = vld [vmem:[#allocation5 + $0x4c] sm:$0xf]
        %v316 = vld [vmem:[#allocation5 + $0x50] sm:$0xf]
        %v317 = vld [vmem:[#allocation5 + $0x54] sm:$0xf]
        %v318 = vld [vmem:[#allocation5 + $0x58] sm:$0xf]
        %v319 = vld [vmem:[#allocation5 + $0x5c] sm:$0xf]
        %v320 = vld [vmem:[#allocation5 + $0x60] sm:$0xf]
        %v321 = vld [vmem:[#allocation5 + $0x64] sm:$0xf]
        %v322 = vld [vmem:[#allocation5 + $0x68] sm:$0xf]
        %v323 = vld [vmem:[#allocation5 + $0x6c] sm:$0xf]
        %v324 = vld [vmem:[#allocation5 + $0x70] sm:$0xf]
        %v325 = vld [vmem:[#allocation5 + $0x74] sm:$0xf]
        %v326 = vld [vmem:[#allocation5 + $0x78] sm:$0xf]
        %v327 = vld [vmem:[#allocation5 + $0x7c] sm:$0xf]
        %v332 = vunpack.c.l.b16 %v292
        %v333 = vunpack.c.h.b16 %v292
        %v334 = vunpack.c.l.b16 %v293
        %v335 = vunpack.c.h.b16 %v293
        %v336 = vunpack.c.l.b16 %v294
        %v337 = vunpack.c.h.b16 %v294
        %v338 = vunpack.c.l.b16 %v295
        %v339 = vunpack.c.h.b16 %v295
        %v340 = vpack.c.b16 %v334, %v332
        %v341 = vpack.c.b16 %v335, %v333
        %v342 = vpack.c.b16 %v338, %v336
        %v343 = vpack.c.b16 %v339, %v337
        %v380 = vunpack.c.l.b16 %v296
        %v381 = vunpack.c.l.b16 %v297
        %v382 = vunpack.c.l.b16 %v298
        %v383 = vunpack.c.l.b16 %v299
        %v384 = vunpack.c.l.b16 %v300
        %v385 = vunpack.c.l.b16 %v301
        %v386 = vunpack.c.l.b16 %v302
        %v387 = vunpack.c.l.b16 %v303
        %v388 = vunpack.c.l.b16 %v304
        %v389 = vunpack.c.l.b16 %v305
        %v390 = vunpack.c.l.b16 %v306
        %v391 = vunpack.c.l.b16 %v307
        %v392 = vunpack.c.l.b16 %v308
        %v393 = vunpack.c.l.b16 %v309
        %v394 = vunpack.c.l.b16 %v310
        %v395 = vunpack.c.l.b16 %v311
        %v396 = vunpack.c.l.b16 %v312
        %v397 = vunpack.c.l.b16 %v313
        %v398 = vunpack.c.l.b16 %v314
        %v399 = vunpack.c.l.b16 %v315
        %v400 = vunpack.c.l.b16 %v316
        %v401 = vunpack.c.l.b16 %v317
        %v402 = vunpack.c.l.b16 %v318
        %v403 = vunpack.c.l.b16 %v319
        %v404 = vunpack.c.l.b16 %v320
        %v405 = vunpack.c.l.b16 %v321
        %v406 = vunpack.c.l.b16 %v322
        %v407 = vunpack.c.l.b16 %v323
        %v408 = vunpack.c.l.b16 %v324
        %v409 = vunpack.c.l.b16 %v325
        %v410 = vunpack.c.l.b16 %v326
        %v411 = vunpack.c.l.b16 %v327
        %v412 = vpack.c.b16 %v381, %v380
        %v413 = vpack.c.b16 %v383, %v382
        %v414 = vpack.c.b16 %v385, %v384
        %v415 = vpack.c.b16 %v387, %v386
        %v416 = vpack.c.b16 %v389, %v388
        %v417 = vpack.c.b16 %v391, %v390
        %v418 = vpack.c.b16 %v393, %v392
        %v419 = vpack.c.b16 %v395, %v394
        %v420 = vpack.c.b16 %v397, %v396
        %v421 = vpack.c.b16 %v399, %v398
        %v422 = vpack.c.b16 %v401, %v400
        %v423 = vpack.c.b16 %v403, %v402
        %v424 = vpack.c.b16 %v405, %v404
        %v425 = vpack.c.b16 %v407, %v406
        %v426 = vpack.c.b16 %v409, %v408
        %v427 = vpack.c.b16 %v411, %v410
        %444 = vmatprep.subr.bf16.mxu0 0
        %445 = vmatpush1.bf16.msra.mxu0 %v412
        %446 = vmatprep.subr.bf16.mxu0 0
        %447 = vmatpush1.bf16.msra.mxu0 %v413
        %448 = vmatprep.subr.bf16.mxu0 0
        %449 = vmatpush1.bf16.msra.mxu0 %v414
        %450 = vmatprep.subr.bf16.mxu0 0
        %451 = vmatpush1.bf16.msra.mxu0 %v415
        %452 = vmatprep.subr.bf16.mxu0 0
        %453 = vmatpush1.bf16.msra.mxu0 %v416
        %454 = vmatprep.subr.bf16.mxu0 0
        %455 = vmatpush1.bf16.msra.mxu0 %v417
        %456 = vmatprep.subr.bf16.mxu0 0
        %457 = vmatpush1.bf16.msra.mxu0 %v418
        %458 = vmatprep.subr.bf16.mxu0 0
        %459 = vmatpush1.bf16.msra.mxu0 %v419
        %460 = vmatprep.subr.bf16.mxu0 0
        %461 = vmatpush1.bf16.msra.mxu0 %v420
        %462 = vmatprep.subr.bf16.mxu0 0
        %463 = vmatpush1.bf16.msra.mxu0 %v421
        %464 = vmatprep.subr.bf16.mxu0 0
        %465 = vmatpush1.bf16.msra.mxu0 %v422
        %466 = vmatprep.subr.bf16.mxu0 0
        %467 = vmatpush1.bf16.msra.mxu0 %v423
        %468 = vmatprep.subr.bf16.mxu0 0
        %469 = vmatpush1.bf16.msra.mxu0 %v424
        %470 = vmatprep.subr.bf16.mxu0 0
        %471 = vmatpush1.bf16.msra.mxu0 %v425
        %472 = vmatprep.subr.bf16.mxu0 0
        %473 = vmatpush1.bf16.msra.mxu0 %v426
        %474 = vmatprep.subr.bf16.mxu0 0
        %475 = vmatpush1.bf16.msra.mxu0 %v427
        %476 = vmatprep.mubr.bf16.mxu0 %v341
        %477 = vmatmul.mubr.bf16.gmra.mrb[0].mxu0 %v340
        %v478 = vpop.f32.mrb[0].mxu0
        %v479 = vadd.f32 0.0, %v478
        %v480 = vpop.f32.mrb[0].mxu0
        %v481 = vpop.f32.mrb[0].mxu0
        %v482 = vadd.f32 0.0, %v481
        %v483 = vpop.f32.mrb[0].mxu0
        %484 = vmatprep.mubr.bf16.mxu0 %v343
        %485 = vmatmul.mubr.bf16.gmra.mrb[0].mxu0 %v342
        %v486 = vpop.f32.mrb[0].mxu0
        %v487 = vadd.f32 0.0, %v486
        %v488 = vpop.f32.mrb[0].mxu0
        %v489 = vpop.f32.mrb[0].mxu0
        %v490 = vadd.f32 0.0, %v489
        %v491 = vpop.f32.mrb[0].mxu0
        %492 = vdwg.mxu0
        %v497 = vunpack.c.l.b16 %v284
        %v498 = vunpack.c.l.b16 %v285
        %v499 = vunpack.c.l.b16 %v286
        %v500 = vunpack.c.l.b16 %v287
        %v501 = vpack.c.b16 %v498, %v497
        %v502 = vpack.c.b16 %v500, %v499
        %v507 = vunpack.c.l.b16 %v288
        %v508 = vunpack.c.l.b16 %v289
        %v509 = vunpack.c.l.b16 %v290
        %v510 = vunpack.c.l.b16 %v291
        %v511 = vpack.c.b16 %v508, %v507
        %v512 = vpack.c.b16 %v510, %v509
        %vm515 = vcmask 261120
        %v517 = vsel %vm515, %v501, 0
        %v520 = vsel %vm515, %v502, 0
        %522 = vmatprep.subr.bf16.mxu0 0
        %523 = vmatpush1.bf16.msra.mxu0 %v511
        %524 = vmatprep.subr.bf16.mxu0 0
        %525 = vmatpush1.bf16.msra.mxu0 %v512
        %526 = vmatprep.subr.bf16.mxu0 0
        %527 = vmatpush1.bf16.msra.mxu0 0
        %528 = vmatprep.subr.bf16.mxu0 0
        %529 = vmatpush1.bf16.msra.mxu0 0
        %530 = vmatprep.subr.bf16.mxu0 0
        %531 = vmatpush1.bf16.msra.mxu0 0
        %532 = vmatprep.subr.bf16.mxu0 0
        %533 = vmatpush1.bf16.msra.mxu0 0
        %534 = vmatprep.subr.bf16.mxu0 0
        %535 = vmatpush1.bf16.msra.mxu0 0
        %536 = vmatprep.subr.bf16.mxu0 0
        %537 = vmatpush1.bf16.msra.mxu0 0
        %538 = vmatprep.subr.bf16.mxu0 0
        %539 = vmatpush1.bf16.msra.mxu0 0
        %540 = vmatprep.subr.bf16.mxu0 0
        %541 = vmatpush1.bf16.msra.mxu0 0
        %542 = vmatprep.subr.bf16.mxu0 0
        %543 = vmatpush1.bf16.msra.mxu0 0
        %544 = vmatprep.subr.bf16.mxu0 0
        %545 = vmatpush1.bf16.msra.mxu0 0
        %546 = vmatprep.subr.bf16.mxu0 0
        %547 = vmatpush1.bf16.msra.mxu0 0
        %548 = vmatprep.subr.bf16.mxu0 0
        %549 = vmatpush1.bf16.msra.mxu0 0
        %550 = vmatprep.subr.bf16.mxu0 0
        %551 = vmatpush1.bf16.msra.mxu0 0
        %552 = vmatprep.subr.bf16.mxu0 0
        %553 = vmatpush1.bf16.msra.mxu0 0
        %554 = vmatprep.mubr.bf16.mxu0 0
        %555 = vmatmul.mubr.bf16.gmra.mrb[0].mxu0 %v517
        %v556 = vpop.f32.mrb[0].mxu0
        %v557 = vadd.f32 %v479, %v556
        %v558 = vpop.f32.mrb[0].mxu0
        %v559 = vpop.f32.mrb[0].mxu0
        %v560 = vadd.f32 %v482, %v559
        %v561 = vpop.f32.mrb[0].mxu0
        %562 = vmatprep.mubr.bf16.mxu0 0
        %563 = vmatmul.mubr.bf16.gmra.mrb[0].mxu0 %v520
        %v564 = vpop.f32.mrb[0].mxu0
        %v565 = vadd.f32 %v487, %v564
        %v566 = vpop.f32.mrb[0].mxu0
        %v567 = vpop.f32.mrb[0].mxu0
        %v568 = vadd.f32 %v490, %v567
        %v569 = vpop.f32.mrb[0].mxu0
        %570 = vdwg.mxu0
        %v571 = vld [vmem:[%s4] sm:$0x1]
        %v573 = vlaneseq
        %v574 = vshrl.u32 %v573, 7
        %v575 = vsub.s32 0, %v574
        %v576 = vrot.slane %v571, %v575
        %v578 = vadd.f32 %v557, %v576
        %v579 = vadd.f32 %v560, %v576
        %v580 = vadd.f32 %v565, %v576
        %v581 = vadd.f32 %v568, %v576
        %582 = vst [vmem:[%s274] sm:$0xff] %v578
        %583 = vst [vmem:[%s274 + $0x8] sm:$0xff] %v579
        %584 = vst [vmem:[%s274 + $0x10] sm:$0xff] %v580
        %585 = vst [vmem:[%s274 + $0x18] sm:$0xff] %v581
        %s586 = sand.u32 %s146, 1
        %s587 = scalar_lea.sflag [#allocation4], %s586
        %s588 = sand.u32 %s146, 1
        %s589 = smul.addr %s588, 32
        %s590 = scalar_lea.vmem [#allocation7], %s589
        // Predicated region
        $region49: #{tpu_custom_call.1} parent=39 // pred_check
          %p591 = pneg %p156
        $region50: #{tpu_custom_call.1} parent=39 // pred_check_branch
          %593 = sbr.rel (%p591) target = $region52
        $region51: #{tpu_custom_call.1} parent=39 // pred_region
          %s594 = smul.u32 4, %s23
          %s596 = ssub.s32 512, 512
          %597 = vsyncadd %s587, %s596
          %s598 = smul.addr %s594, 128
          %s599 = scalar_lea.hbm %s5, %s598
          %s600 = sshll.u32 %s590, 4
          %s601 = int_to_ptr.vmem [resolvable:$true] %s600
          %606 = dma.vmem_to_hbm [thread:$0]  %s601, 512, %s599, %s587, 128, 128, 8
        $region52: #{tpu_custom_call.1} parent=39 // pred_fallthru
          _
      $region40: #{tpu_custom_call.1} parent=5 // pred_fallthru
        _
      %p607 = scmp.le.s32.totalorder 2, %s18
      // Predicated region
      $region53: #{tpu_custom_call.1} parent=5 // pred_check
        %p608 = pneg %p607
      $region54: #{tpu_custom_call.1} parent=5 // pred_check_branch
        %610 = sbr.rel (%p608) target = $region56
      $region55: #{tpu_custom_call.1} parent=5 // pred_region
        %s611 = ssub.s32 %s18, 2
        // Predicated region
        $region57: #{tpu_custom_call.1} parent=55 // pred_check
          %p612 = pneg %p162
        $region58: #{tpu_custom_call.1} parent=55 // pred_check_branch
          %614 = sbr.rel (%p612) target = $region60
        $region59: #{tpu_custom_call.1} parent=55 // pred_region
          %s615 = sand.u32 %s147, 1
          %s616 = scalar_lea.sflag [#allocation4], %s615
          %s617 = sand.u32 %s147, 1
          %s618 = smul.addr %s617, 32
          %s619 = scalar_lea.vmem [#allocation7], %s618
          %620 = dma.done %s616, 512
        $region60: #{tpu_custom_call.1} parent=55 // pred_fallthru
          _
      $region56: #{tpu_custom_call.1} parent=5 // pred_fallthru
        _
    $region6: #{tpu_custom_call.1} parent=1 // loop_footer
      %s22 = sadd.s32 1, %s18
    $region7: #{tpu_custom_call.1} parent=1 // loop_footer_branch
      %17 = sbr.rel target = $region3
    $region8: #{tpu_custom_call.1} parent=1 // loop_exit
      _
    %621 = vsyncpa [#allocation3], 1
    %s622 = scalar_lea.sflag [#allocation3], 1
    %623 = vsyncpa %s622, 1
    %624 = vsyncpa [#allocation6], 1
    %625 = vsyncpa [#allocation4], 1
    %s626 = scalar_lea.sflag [#allocation4], 1
    %627 = vsyncpa %s626, 1

</llo_original>
